<compile_context>
chip_gen: v7x
topology: tpu7x:2x2x1
jax: 0.10.0
libtpu: 0.0.40
codegen_flags: <defaults>
</compile_context>

<pallas_src>
import functools
import math

import jax
import jax.numpy as jnp
import numpy as np
from jax import lax
from jax.experimental import pallas as pl
from jax.experimental.pallas import tpu as pltpu


def _pe_dropout_kernel(seed_ref, x_ref, pe_ref, o_ref, *, p, train):
    # x_ref:  (tS, N, E) VMEM tile
    # pe_ref: (tS, 1, E) VMEM tile (broadcasts over batch)
    # seed_ref: (1,) SMEM int32 dropout seed
    if train and p >= 1.0:
        # torch.nn.Dropout(p=1.0) zeroes everything.
        o_ref[...] = jnp.zeros(o_ref.shape, o_ref.dtype)
        return

    y = x_ref[...] + pe_ref[...]  # broadcast add over batch axis

    if train and p > 0.0:
        tS, N, E = x_ref.shape
        # Global per-element counter (unique across the whole array, so the
        # dropout mask does NOT repeat across grid tiles).
        s_loc = lax.broadcasted_iota(jnp.int32, y.shape, 0)
        n_loc = lax.broadcasted_iota(jnp.int32, y.shape, 1)
        e_loc = lax.broadcasted_iota(jnp.int32, y.shape, 2)
        g_s = pl.program_id(0) * tS + s_loc
        flat = (g_s * N + n_loc) * E + e_loc

        # splitmix32-style finalizer on (counter, seed) -> uniform 32-bit hash.
        # Plain VPU integer ops only (add/mul/xor/shift), lowers everywhere.
        ctr = flat.astype(jnp.uint32)
        seed_u = seed_ref[0].astype(jnp.uint32)
        h = ctr + seed_u * jnp.uint32(0x9E3779B9)
        h = (h ^ (h >> 16)) * jnp.uint32(0x7FEB352D)
        h = (h ^ (h >> 15)) * jnp.uint32(0x846CA68B)
        h = h ^ (h >> 16)

        # Use the top 31 bits and a signed compare (no unsigned compare needed).
        bits31 = (h >> 1).astype(jnp.int32)              # uniform in [0, 2^31)
        threshold = int(round(p * float(2 ** 31)))       # p < 1 here -> fits int32
        keep = bits31 >= jnp.int32(threshold)            # P(keep) = 1 - p

        # Inverted dropout; scale is a compile-time Python constant.
        y = jnp.where(keep, y * (1.0 / (1.0 - p)), 0.0)

    o_ref[...] = y.astype(o_ref.dtype)


def make_positional_encoding_table(max_len, d_model, dtype=jnp.float32):
    """Same buffer as the torch __init__: shape (max_len, 1, d_model)."""
    position = jnp.arange(max_len, dtype=jnp.float32)[:, None]            # (L, 1)
    div_term = jnp.exp(
        jnp.arange(0, d_model, 2, dtype=jnp.float32)
        * (-math.log(10000.0) / d_model)
    )                                                                     # (E/2,)
    angles = position * div_term                                          # (L, E/2)
    pe = jnp.zeros((max_len, d_model), dtype=jnp.float32)
    pe = pe.at[:, 0::2].set(jnp.sin(angles))
    pe = pe.at[:, 1::2].set(jnp.cos(angles))
    return pe[:, None, :].astype(dtype)                                   # (L, 1, E)


def _choose_seq_tile(S, N, E, itemsize, target_bytes=4 * 1024 * 1024):
    """Largest sequence tile whose (tS, N, E) block is ~target_bytes."""
    row_bytes = max(1, N * E * itemsize)
    rows = max(1, target_bytes // row_bytes)
    ts = int(min(S, rows))
    if ts >= 8:
        ts -= ts % 8  # keep DMAs sublane-aligned when possible
    return max(1, ts)


def positional_encoding_forward(x, pe, seed, *, p=0.1, train=True, block_rows=None):
    """x: (S, N, E); pe: (max_len, 1, E); seed: python int."""
    S, N, E = x.shape
    max_len = pe.shape[0]
    assert pe.shape == (max_len, 1, E) and S <= max_len

    if block_rows is None:
        block_rows = _choose_seq_tile(S, N, E, jnp.dtype(x.dtype).itemsize)
    tS = int(min(block_rows, S))
    grid = (pl.cdiv(S, tS),)

    seed_arr = jnp.asarray([seed], dtype=jnp.int32)
    kernel = functools.partial(_pe_dropout_kernel, p=float(p), train=bool(train))

    return pl.pallas_call(
        kernel,
        out_shape=jax.ShapeDtypeStruct((S, N, E), x.dtype),
        grid=grid,
        in_specs=[
            pl.BlockSpec(memory_space=pltpu.MemorySpace.SMEM),     # seed scalar
            pl.BlockSpec((tS, N, E), lambda i: (i, 0, 0)),         # x tile
            pl.BlockSpec((tS, 1, E), lambda i: (i, 0, 0)),         # pe rows for tile
        ],
        out_specs=pl.BlockSpec((tS, N, E), lambda i: (i, 0, 0)),
        compiler_params=pltpu.CompilerParams(
            dimension_semantics=("parallel",),        # shard tiles across TCs (v7x)
            vmem_limit_bytes=32 * 1024 * 1024,        # explicit: fits v7x's 64 MiB VMEM
        ),
    )(seed_arr, x, pe)


if __name__ == "__main__":
    # Small shapes consistent with the module's forward: (seq, batch, d_model).
    # d_model=128 keeps the last (lane) dim a multiple of 128 -> unmasked stores.
    S, N, E = 16, 2, 128
    MAX_LEN = 64
    P_DROP = 0.1

    key = jax.random.PRNGKey(0)
    x = jax.random.normal(key, (S, N, E), dtype=jnp.float32)
    pe = make_positional_encoding_table(MAX_LEN, E)
    ref = np.asarray(x + pe[:S])

    # Eval mode (dropout is identity) — exact check vs. the pure-JAX reference.
    # block_rows=8 -> grid=(2,) so the tiled path is exercised even at demo size.
    out_eval = positional_encoding_forward(x, pe, seed=0, p=P_DROP, train=False,
                                           block_rows=8)
    out_eval = np.asarray(jax.block_until_ready(out_eval))
    np.testing.assert_allclose(out_eval, ref, rtol=1e-6, atol=1e-6)

    # Train mode — inverted dropout inside the kernel, deterministic seed.
    out_train = positional_encoding_forward(x, pe, seed=1234, p=P_DROP, train=True,
                                            block_rows=8)
    out_train = np.asarray(jax.block_until_ready(out_train))
    assert out_train.shape == (S, N, E)

    dropped = out_train == 0.0
    frac = float(dropped.mean())
    assert 0.01 <= frac <= 0.30, f"dropout fraction {frac} far from p={P_DROP}"
    kept = ~dropped
    np.testing.assert_allclose(out_train[kept], ref[kept] / (1.0 - P_DROP),
                               rtol=1e-5, atol=1e-6)

    print("KERNEL_OK")
</pallas_src>

<mosaic_0001>
module attributes {stable_mosaic.version = 11 : i64} {
  func.func @_pe_dropout_kernel(%arg0: i32, %arg1: memref<1xi32, #tpu.memory_space<smem>>, %arg2: memref<8x2x128xf32, #tpu.memory_space<vmem>>, %arg3: memref<8x1x128xf32, #tpu.memory_space<vmem>>, %arg4: memref<8x2x128xf32, #tpu.memory_space<vmem>>) attributes {dimension_semantics = [#tpu.dimension_semantics<parallel>], iteration_bounds = array<i64: 2>, scalar_prefetch = 0 : i64, scratch_operands = 0 : i64, tpu.core_type = #tpu.core_type<tc>, window_params = [{transform_indices = @transform_0, window_bounds = array<i64: 1>}, {transform_indices = @transform_1, window_bounds = array<i64: 8, 2, 128>}, {transform_indices = @transform_2, window_bounds = array<i64: 8, 1, 128>}, {transform_indices = @transform_3, window_bounds = array<i64: 8, 2, 128>}]} {
    %c0 = arith.constant 0 : index
    %c0_0 = arith.constant 0 : index
    %c0_1 = arith.constant 0 : index
    %0 = vector.load %arg2[%c0, %c0_0, %c0_1] : memref<8x2x128xf32, #tpu.memory_space<vmem>>, vector<8x2x128xf32>
    %c0_2 = arith.constant 0 : index
    %c0_3 = arith.constant 0 : index
    %c0_4 = arith.constant 0 : index
    %1 = vector.load %arg3[%c0_2, %c0_3, %c0_4] : memref<8x1x128xf32, #tpu.memory_space<vmem>>, vector<8x1x128xf32>
    %2 = vector.broadcast %1 : vector<8x1x128xf32> to vector<8x2x128xf32>
    %3 = arith.addf %0, %2 : vector<8x2x128xf32>
    %c0_5 = arith.constant 0 : index
    %c0_6 = arith.constant 0 : index
    %c0_7 = arith.constant 0 : index
    %4 = vector.load %arg4[%c0_5, %c0_6, %c0_7] : memref<8x2x128xf32, #tpu.memory_space<vmem>>, vector<8x2x128xf32>
    tpu.vector_store %arg4[%c0_5, %c0_6, %c0_7], %3 {strides = array<i32>} : memref<8x2x128xf32, #tpu.memory_space<vmem>>, vector<8x2x128xf32>,
    return
  }
  func.func @transform_0(%arg0: i32) -> i32 {
    %c0_i32 = arith.constant 0 : i32
    %c0_i32_0 = arith.constant 0 : i32
    return %c0_i32 : i32
  }
  func.func @transform_1(%arg0: i32) -> (i32, i32, i32) {
    %c0_i32 = arith.constant 0 : i32
    %c0_i32_0 = arith.constant 0 : i32
    %c0_i32_1 = arith.constant 0 : i32
    return %arg0, %c0_i32, %c0_i32_0 : i32, i32, i32
  }
  func.func @transform_2(%arg0: i32) -> (i32, i32, i32) {
    %c0_i32 = arith.constant 0 : i32
    %c0_i32_0 = arith.constant 0 : i32
    %c0_i32_1 = arith.constant 0 : i32
    return %arg0, %c0_i32, %c0_i32_0 : i32, i32, i32
  }
  func.func @transform_3(%arg0: i32) -> (i32, i32, i32) {
    %c0_i32 = arith.constant 0 : i32
    %c0_i32_0 = arith.constant 0 : i32
    %c0_i32_1 = arith.constant 0 : i32
    return %arg0, %c0_i32, %c0_i32_0 : i32, i32, i32
  }
}

</mosaic_0001>

<llo_original>
// kernel: tpu_custom_call.1
$region0: #{tpu_custom_call.1}
  #allocation0 [shape = 'u32[]', space=smem, size = 0x4, offset = 0x4, fixed_abs, tag = 'smem constant byte address 0x4 - core index']
  #allocation1 [shape = 'u32[144,128]{1,0:T(1,128)}', space=vmem, size = 0x12000, scoped, tag = 'internal scratch']
  #allocation2 [shape = 's32[1]{0:T(128)S(6)}', space=smem, size = 0x200, scoped, tag = 'scoped memory for tpu_custom_call.1']
  %s0 = inlined_call_operand.<no memory space> [shape: s32[1], index: 0, kind: input, shape index: {}]
  %s1 = inlined_call_operand.hbm [shape: f32[16,2,128], index: 1, kind: input, shape index: {}]
  %s2 = inlined_call_operand.hbm [shape: f32[64,1,128], index: 2, kind: input, shape index: {}]
  %s3 = inlined_call_operand.hbm [shape: f32[16,2,128], index: 3, kind: output, shape index: {}]
  %s4 = sld [smem:[#allocation0]]
  $region53: #{tpu_custom_call.1} parent=0
    _
  %s6 = ssub.s32 1, %s4
  %s7 = scalar_select 0, %s6, %s4
  %8 = sst [smem:[#allocation2]] %s0
  $region1: #{tpu_custom_call.1} parent=0
    #allocation3 [shape = 'u8[16384]{0}', space=vmem, size = 0x4000, scoped, tag = 'input window, operand 1']
    #allocation4 [shape = 's32[2]{0}', space=sflag, size = 0x8, scoped, tag = 'scoped memory for tpu_custom_call.1']
    #allocation5 [shape = 's32[2]{0}', space=sflag, size = 0x8, scoped, tag = 'scoped memory for tpu_custom_call.1']
    #allocation6 [shape = 'u8[8192]{0}', space=vmem, size = 0x2000, scoped, tag = 'input window, operand 2']
    #allocation7 [shape = 's32[2]{0}', space=sflag, size = 0x8, scoped, tag = 'scoped memory for tpu_custom_call.1']
    #allocation8 [shape = 'u8[16384]{0}', space=vmem, size = 0x4000, scoped, tag = 'output window, operand 0']
    %9 = vsyncpa [#allocation4], 0
    %s10 = scalar_lea.sflag [#allocation4], 1
    %11 = vsyncpa %s10, 0
    %12 = vsyncpa [#allocation7], 0
    %s13 = scalar_lea.sflag [#allocation7], 1
    %14 = vsyncpa %s13, 0
    %15 = vsyncpa [#allocation5], 0
    %s16 = scalar_lea.sflag [#allocation5], 1
    %17 = vsyncpa %s16, 0
    loop: start=0, step=1, limit=4
    $region2: #{tpu_custom_call.1} parent=1 // loop_pre_header
      _
    $region3: #{tpu_custom_call.1} parent=1 // loop_header
      %s19 = sphi 0, %s23
      %p20 = scmp.ge.s32.totalorder %s19, 4
      %s27 = sphi 0, %s27
      %s29 = sphi 0, %s27
      %s30 = sphi 0, %s29
      %s44 = sphi 0, %s30
      %s50 = sphi 0, %s52
      %s53 = sphi 0, %s50
      %s54 = sphi 0, %s53
      %s70 = sphi 0, %s54
      %s76 = sphi 0, %s78
      %s79 = sphi 0, %s76
      %s80 = sphi 0, %s79
      %s96 = sphi 0, %s80
      %s102 = sphi 0, %s104
      %s105 = sphi 0, %s102
      %s106 = sphi 0, %s105
      %s122 = sphi 0, %s106
    $region4: #{tpu_custom_call.1} parent=1 // loop_header_branch
      %22 = sbr.rel (%p20) target = $region8
    $region5: #{tpu_custom_call.1} parent=1 // loop_body
      %s24 = ssub.s32 %s19, 1
      %s25 = ssub.s32 %s19, 2
      %s26 = sadd.s32 %s19, 1
      %s28 = sadd.s32 %s27, 1
      %p31 = scmp.eq.s32.totalorder %s19, 1
      %p32 = scmp.ne.s32.totalorder %s27, %s29
      %p33 = scmp.eq.s32.totalorder %s19, 0
      %p34 = por %p32, %p33
      %p35 = scmp.ne.s32.totalorder %s27, %s29
      %p36 = scmp.eq.s32.totalorder %s24, 1
      %p37 = por %p35, %p36
      %p38 = scmp.ne.s32.totalorder %s29, %s30
      %p39 = scmp.eq.s32.totalorder %s24, 0
      %p40 = por %p38, %p39
      %p41 = scmp.ne.s32.totalorder %s29, %s30
      %p42 = scmp.eq.s32.totalorder %s25, 1
      %p43 = por %p41, %p42
      %p45 = scmp.ne.s32.totalorder %s30, %s44
      %p46 = scmp.eq.s32.totalorder %s25, 0
      %p47 = por %p45, %p46
      %s48 = ssub.s32 %s19, %s26
      %p49 = scmp.eq.s32.totalorder %s48, 0
      %s51 = sadd.s32 %s50, 1
      %s52 = scalar_select %p49, %s50, %s51
      %p55 = pneg %p49
      %p56 = scmp.eq.s32.totalorder %s19, 1
      %p57 = por %p55, %p56
      %p58 = scmp.ne.s32.totalorder %s50, %s53
      %p59 = scmp.eq.s32.totalorder %s19, 0
      %p60 = por %p58, %p59
      %p61 = scmp.ne.s32.totalorder %s50, %s53
      %p62 = scmp.eq.s32.totalorder %s24, 1
      %p63 = por %p61, %p62
      %p64 = scmp.ne.s32.totalorder %s53, %s54
      %p65 = scmp.eq.s32.totalorder %s24, 0
      %p66 = por %p64, %p65
      %p67 = scmp.ne.s32.totalorder %s53, %s54
      %p68 = scmp.eq.s32.totalorder %s25, 1
      %p69 = por %p67, %p68
      %p71 = scmp.ne.s32.totalorder %s54, %s70
      %p72 = scmp.eq.s32.totalorder %s25, 0
      %p73 = por %p71, %p72
      %s74 = ssub.s32 %s19, %s26
      %p75 = scmp.eq.s32.totalorder %s74, 0
      %s77 = sadd.s32 %s76, 1
      %s78 = scalar_select %p75, %s76, %s77
      %p81 = pneg %p75
      %p82 = scmp.eq.s32.totalorder %s19, 1
      %p83 = por %p81, %p82
      %p84 = scmp.ne.s32.totalorder %s76, %s79
      %p85 = scmp.eq.s32.totalorder %s19, 0
      %p86 = por %p84, %p85
      %p87 = scmp.ne.s32.totalorder %s76, %s79
      %p88 = scmp.eq.s32.totalorder %s24, 1
      %p89 = por %p87, %p88
      %p90 = scmp.ne.s32.totalorder %s79, %s80
      %p91 = scmp.eq.s32.totalorder %s24, 0
      %p92 = por %p90, %p91
      %p93 = scmp.ne.s32.totalorder %s79, %s80
      %p94 = scmp.eq.s32.totalorder %s25, 1
      %p95 = por %p93, %p94
      %p97 = scmp.ne.s32.totalorder %s80, %s96
      %p98 = scmp.eq.s32.totalorder %s25, 0
      %p99 = por %p97, %p98
      %s100 = ssub.s32 %s19, %s26
      %p101 = scmp.eq.s32.totalorder %s100, 0
      %s103 = sadd.s32 %s102, 1
      %s104 = scalar_select %p101, %s102, %s103
      %p107 = pneg %p101
      %p108 = scmp.eq.s32.totalorder %s19, 1
      %p109 = por %p107, %p108
      %p110 = scmp.ne.s32.totalorder %s102, %s105
      %p111 = scmp.eq.s32.totalorder %s19, 0
      %p112 = por %p110, %p111
      %p113 = scmp.ne.s32.totalorder %s102, %s105
      %p114 = scmp.eq.s32.totalorder %s24, 1
      %p115 = por %p113, %p114
      %p116 = scmp.ne.s32.totalorder %s105, %s106
      %p117 = scmp.eq.s32.totalorder %s24, 0
      %p118 = por %p116, %p117
      %p119 = scmp.ne.s32.totalorder %s105, %s106
      %p120 = scmp.eq.s32.totalorder %s25, 1
      %p121 = por %p119, %p120
      %p123 = scmp.ne.s32.totalorder %s106, %s122
      %p124 = scmp.eq.s32.totalorder %s25, 0
      %p125 = por %p123, %p124
      %p126 = scmp.le.s32.totalorder 1, %s19
      %p127 = scmp.lt.s32.totalorder %s19, 3
      %p128 = pnand %p126, %p127
      %p129 = pneg %p128
      // Predicated region
      $region9: #{tpu_custom_call.1} parent=5 // pred_check
        _
      $region10: #{tpu_custom_call.1} parent=5 // pred_check_branch
        %131 = sbr.rel (%p128) target = $region12
      $region11: #{tpu_custom_call.1} parent=5 // pred_region
        %s132 = ssub.s32 %s19, 1
        // Predicated region
        $region13: #{tpu_custom_call.1} parent=11 // pred_check
          %p133 = pneg %p40
        $region14: #{tpu_custom_call.1} parent=11 // pred_check_branch
          %135 = sbr.rel (%p133) target = $region16
        $region15: #{tpu_custom_call.1} parent=11 // pred_region
          _
        $region16: #{tpu_custom_call.1} parent=11 // pred_fallthru
          _
      $region12: #{tpu_custom_call.1} parent=5 // pred_fallthru
        _
      %p136 = scmp.lt.s32.totalorder %s19, 2
      // Predicated region
      $region17: #{tpu_custom_call.1} parent=5 // pred_check
        %p137 = pneg %p136
      $region18: #{tpu_custom_call.1} parent=5 // pred_check_branch
        %139 = sbr.rel (%p137) target = $region20
      $region19: #{tpu_custom_call.1} parent=5 // pred_region
        // Predicated region
        $region21: #{tpu_custom_call.1} parent=19 // pred_check
          %p140 = pneg %p60
        $region22: #{tpu_custom_call.1} parent=19 // pred_check_branch
          %142 = sbr.rel (%p140) target = $region24
        $region23: #{tpu_custom_call.1} parent=19 // pred_region
          %s143 = sand.u32 %s50, 1
          %s144 = scalar_lea.sflag [#allocation4], %s143
          %s145 = sand.u32 %s50, 1
          %s146 = smul.addr %s145, 16
          %s147 = scalar_lea.vmem [#allocation3], %s146
          %s148 = smul.u32 8, %s19
          %s150 = ssub.s32 256, 256
          %151 = vsyncadd %s144, %s150
          %s152 = smul.addr %s148, 32
          %s153 = scalar_lea.hbm %s1, %s152
          %s154 = sshll.u32 %s147, 4
          %s155 = int_to_ptr.vmem [resolvable:$true] %s154
          %160 = dma.hbm_to_vmem [thread:$0]  %s153, 256, %s155, %s144, 32, 32, 2
        $region24: #{tpu_custom_call.1} parent=19 // pred_fallthru
          _
        // Predicated region
        $region25: #{tpu_custom_call.1} parent=19 // pred_check
          %p161 = pneg %p86
        $region26: #{tpu_custom_call.1} parent=19 // pred_check_branch
          %163 = sbr.rel (%p161) target = $region28
        $region27: #{tpu_custom_call.1} parent=19 // pred_region
          %s164 = sand.u32 %s76, 1
          %s165 = scalar_lea.sflag [#allocation7], %s164
          %s166 = sand.u32 %s76, 1
          %s167 = smul.addr %s166, 8
          %s168 = scalar_lea.vmem [#allocation6], %s167
          %s169 = smul.u32 8, %s19
          %s171 = ssub.s32 128, 128
          %172 = vsyncadd %s165, %s171
          %s173 = smul.addr %s169, 16
          %s174 = scalar_lea.hbm %s2, %s173
          %s175 = sshll.u32 %s168, 4
          %s176 = int_to_ptr.vmem [resolvable:$true] %s175
          %181 = dma.hbm_to_vmem [thread:$0]  %s174, 128, %s176, %s165, 16, 16, 1
        $region28: #{tpu_custom_call.1} parent=19 // pred_fallthru
          _
      $region20: #{tpu_custom_call.1} parent=5 // pred_fallthru
        _
      %p182 = scmp.le.s32.totalorder 1, %s19
      %p183 = scmp.lt.s32.totalorder %s19, 3
      %p184 = pnand %p182, %p183
      %p185 = pneg %p184
      // Predicated region
      $region29: #{tpu_custom_call.1} parent=5 // pred_check
        _
      $region30: #{tpu_custom_call.1} parent=5 // pred_check_branch
        %187 = sbr.rel (%p184) target = $region32
      $region31: #{tpu_custom_call.1} parent=5 // pred_region
        %s188 = ssub.s32 %s19, 1
        %s189 = sand.u32 %s53, 1
        %s190 = scalar_lea.sflag [#allocation4], %s189
        %s191 = sand.u32 %s53, 1
        %s192 = smul.addr %s191, 16
        %s193 = scalar_lea.vmem [#allocation3], %s192
        // Predicated region
        $region33: #{tpu_custom_call.1} parent=31 // pred_check
          %p194 = pneg %p66
        $region34: #{tpu_custom_call.1} parent=31 // pred_check_branch
          %196 = sbr.rel (%p194) target = $region36
        $region35: #{tpu_custom_call.1} parent=31 // pred_region
          %197 = dma.done %s190, 256
        $region36: #{tpu_custom_call.1} parent=31 // pred_fallthru
          _
        %s198 = sand.u32 %s79, 1
        %s199 = scalar_lea.sflag [#allocation7], %s198
        %s200 = sand.u32 %s79, 1
        %s201 = smul.addr %s200, 8
        %s202 = scalar_lea.vmem [#allocation6], %s201
        // Predicated region
        $region37: #{tpu_custom_call.1} parent=31 // pred_check
          %p203 = pneg %p92
        $region38: #{tpu_custom_call.1} parent=31 // pred_check_branch
          %205 = sbr.rel (%p203) target = $region40
        $region39: #{tpu_custom_call.1} parent=31 // pred_region
          %206 = dma.done %s199, 128
        $region40: #{tpu_custom_call.1} parent=31 // pred_fallthru
          _
        %p207 = pneg %p40
        %p208 = pneg %p37
        %s209 = sand.u32 %s53, 1
        %s210 = scalar_lea.sflag [#allocation4], %s209
        %s211 = sand.u32 %s53, 1
        %s212 = smul.addr %s211, 16
        %s213 = scalar_lea.vmem [#allocation3], %s212
        %p214 = pneg %p66
        %p215 = pneg %p63
        %s216 = sand.u32 %s79, 1
        %s217 = scalar_lea.sflag [#allocation7], %s216
        %s218 = sand.u32 %s79, 1
        %s219 = smul.addr %s218, 8
        %s220 = scalar_lea.vmem [#allocation6], %s219
        %p221 = pneg %p92
        %p222 = pneg %p89
        %p223 = pneg %p118
        %p224 = pneg %p115
        %s225 = sand.u32 %s105, 1
        %s226 = scalar_lea.sflag [#allocation5], %s225
        %s227 = sand.u32 %s105, 1
        %s228 = smul.addr %s227, 16
        %s229 = scalar_lea.vmem [#allocation8], %s228
        %s230 = smul.u32 8, %s24
        %s231 = smul.u32 8, %s24
        %s232 = smul.u32 8, %s24
        %v233 = vld [vmem:[%s193] sm:$0x3]
        %v234 = vld [vmem:[%s193 + $0x2] sm:$0x3]
        %v235 = vld [vmem:[%s193 + $0x4] sm:$0x3]
        %v236 = vld [vmem:[%s193 + $0x6] sm:$0x3]
        %v237 = vld [vmem:[%s193 + $0x8] sm:$0x3]
        %v238 = vld [vmem:[%s193 + $0xa] sm:$0x3]
        %v239 = vld [vmem:[%s193 + $0xc] sm:$0x3]
        %v240 = vld [vmem:[%s193 + $0xe] sm:$0x3]
        %v241 = vld [vmem:[%s202] sm:$0x1]
        %v242 = vld [vmem:[%s202 + $0x1] sm:$0x1]
        %v243 = vld [vmem:[%s202 + $0x2] sm:$0x1]
        %v244 = vld [vmem:[%s202 + $0x3] sm:$0x1]
        %v245 = vld [vmem:[%s202 + $0x4] sm:$0x1]
        %v246 = vld [vmem:[%s202 + $0x5] sm:$0x1]
        %v247 = vld [vmem:[%s202 + $0x6] sm:$0x1]
        %v248 = vld [vmem:[%s202 + $0x7] sm:$0x1]
        %v257 = vlaneseq
        %v258 = vshrl.u32 %v257, 7
        %v259 = vsub.s32 0, %v258
        %v260 = vrot.slane %v241, %v259
        %v261 = vlaneseq
        %v262 = vshrl.u32 %v261, 7
        %v263 = vsub.s32 0, %v262
        %v264 = vrot.slane %v242, %v263
        %v265 = vlaneseq
        %v266 = vshrl.u32 %v265, 7
        %v267 = vsub.s32 0, %v266
        %v268 = vrot.slane %v243, %v267
        %v269 = vlaneseq
        %v270 = vshrl.u32 %v269, 7
        %v271 = vsub.s32 0, %v270
        %v272 = vrot.slane %v244, %v271
        %v273 = vlaneseq
        %v274 = vshrl.u32 %v273, 7
        %v275 = vsub.s32 0, %v274
        %v276 = vrot.slane %v245, %v275
        %v277 = vlaneseq
        %v278 = vshrl.u32 %v277, 7
        %v279 = vsub.s32 0, %v278
        %v280 = vrot.slane %v246, %v279
        %v281 = vlaneseq
        %v282 = vshrl.u32 %v281, 7
        %v283 = vsub.s32 0, %v282
        %v284 = vrot.slane %v247, %v283
        %v285 = vlaneseq
        %v286 = vshrl.u32 %v285, 7
        %v287 = vsub.s32 0, %v286
        %v288 = vrot.slane %v248, %v287
        %v297 = vadd.f32 %v233, %v260
        %v298 = vadd.f32 %v234, %v264
        %v299 = vadd.f32 %v235, %v268
        %v300 = vadd.f32 %v236, %v272
        %v301 = vadd.f32 %v237, %v276
        %v302 = vadd.f32 %v238, %v280
        %v303 = vadd.f32 %v239, %v284
        %v304 = vadd.f32 %v240, %v288
        %305 = vst [vmem:[%s229] sm:$0x3] %v297
        %306 = vst [vmem:[%s229 + $0x2] sm:$0x3] %v298
        %307 = vst [vmem:[%s229 + $0x4] sm:$0x3] %v299
        %308 = vst [vmem:[%s229 + $0x6] sm:$0x3] %v300
        %309 = vst [vmem:[%s229 + $0x8] sm:$0x3] %v301
        %310 = vst [vmem:[%s229 + $0xa] sm:$0x3] %v302
        %311 = vst [vmem:[%s229 + $0xc] sm:$0x3] %v303
        %312 = vst [vmem:[%s229 + $0xe] sm:$0x3] %v304
        %s313 = sand.u32 %s105, 1
        %s314 = scalar_lea.sflag [#allocation5], %s313
        %s315 = sand.u32 %s105, 1
        %s316 = smul.addr %s315, 16
        %s317 = scalar_lea.vmem [#allocation8], %s316
        // Predicated region
        $region41: #{tpu_custom_call.1} parent=31 // pred_check
          %p318 = pneg %p115
        $region42: #{tpu_custom_call.1} parent=31 // pred_check_branch
          %320 = sbr.rel (%p318) target = $region44
        $region43: #{tpu_custom_call.1} parent=31 // pred_region
          %s321 = smul.u32 8, %s24
          %s323 = ssub.s32 256, 256
          %324 = vsyncadd %s314, %s323
          %s325 = smul.addr %s321, 32
          %s326 = scalar_lea.hbm %s3, %s325
          %s327 = sshll.u32 %s317, 4
          %s328 = int_to_ptr.vmem [resolvable:$true] %s327
          %333 = dma.vmem_to_hbm [thread:$0]  %s328, 256, %s326, %s314, 32, 32, 2
        $region44: #{tpu_custom_call.1} parent=31 // pred_fallthru
          _
      $region32: #{tpu_custom_call.1} parent=5 // pred_fallthru
        _
      %p334 = scmp.le.s32.totalorder 2, %s19
      // Predicated region
      $region45: #{tpu_custom_call.1} parent=5 // pred_check
        %p335 = pneg %p334
      $region46: #{tpu_custom_call.1} parent=5 // pred_check_branch
        %337 = sbr.rel (%p335) target = $region48
      $region47: #{tpu_custom_call.1} parent=5 // pred_region
        %s338 = ssub.s32 %s19, 2
        // Predicated region
        $region49: #{tpu_custom_call.1} parent=47 // pred_check
          %p339 = pneg %p121
        $region50: #{tpu_custom_call.1} parent=47 // pred_check_branch
          %341 = sbr.rel (%p339) target = $region52
        $region51: #{tpu_custom_call.1} parent=47 // pred_region
          %s342 = sand.u32 %s106, 1
          %s343 = scalar_lea.sflag [#allocation5], %s342
          %s344 = sand.u32 %s106, 1
          %s345 = smul.addr %s344, 16
          %s346 = scalar_lea.vmem [#allocation8], %s345
          %347 = dma.done %s343, 256
        $region52: #{tpu_custom_call.1} parent=47 // pred_fallthru
          _
      $region48: #{tpu_custom_call.1} parent=5 // pred_fallthru
        _
    $region6: #{tpu_custom_call.1} parent=1 // loop_footer
      %s23 = sadd.s32 1, %s19
    $region7: #{tpu_custom_call.1} parent=1 // loop_footer_branch
      %18 = sbr.rel target = $region3
    $region8: #{tpu_custom_call.1} parent=1 // loop_exit
      _
    %348 = vsyncpa [#allocation4], 1
    %s349 = scalar_lea.sflag [#allocation4], 1
    %350 = vsyncpa %s349, 1
    %351 = vsyncpa [#allocation7], 1
    %s352 = scalar_lea.sflag [#allocation7], 1
    %353 = vsyncpa %s352, 1
    %354 = vsyncpa [#allocation5], 1
    %s355 = scalar_lea.sflag [#allocation5], 1
    %356 = vsyncpa %s355, 1

</llo_original>
